<compile_context>
chip_gen: v7x
topology: tpu7x:2x2x1
jax: 0.10.0
libtpu: 0.0.40
codegen_flags: <defaults>
</compile_context>

<pallas_src>
import functools
import math

import jax
import jax.numpy as jnp
from jax.experimental import pallas as pl
from jax.experimental.pallas import tpu as pltpu

EPS = 1e-6
LANE = 128


def layernorm_kernel(alpha_ref, bias_ref, x_ref, o_ref, *, h, hp, eps):
    # alpha_ref, bias_ref: (1,) scalars in SMEM
    # x_ref, o_ref: (tile_rows, hp) in VMEM; only the first `h` lanes carry real data.
    x = x_ref[...].astype(jnp.float32)

    if hp != h:
        lane = jax.lax.broadcasted_iota(jnp.int32, x.shape, dimension=1)
        valid = lane < h
        xm = jnp.where(valid, x, 0.0)
    else:
        valid = None
        xm = x

    # Mean over the real hidden elements only.
    mean = jnp.sum(xm, axis=-1, keepdims=True) * (1.0 / h)
    d = x - mean
    dm = jnp.where(valid, d, 0.0) if valid is not None else d

    # torch.std default: unbiased (Bessel correction, divide by N-1).
    var = jnp.sum(dm * dm, axis=-1, keepdims=True) * (1.0 / max(h - 1, 1))
    std = jnp.sqrt(var)

    # Per-row reciprocal (tile_rows elements on the EUP) instead of a full (tile_rows, hp) divide.
    # Exact (approx=False) so the 1e-5 tolerance check holds.
    inv = pl.reciprocal(std + eps, approx=False)
    scale = alpha_ref[0] * inv                       # (tile_rows, 1)
    o_ref[...] = (d * scale + bias_ref[0]).astype(o_ref.dtype)


def _pick_tile_rows(rows, hp, itemsize, vmem_budget_bytes):
    """Largest row tile whose double-buffered in/out tiles + f32 working copies fit the budget."""
    # 2x double-buffered input + 2x double-buffered output (at I/O dtype) + ~2 f32 working copies.
    per_row = (4 * itemsize + 2 * 4) * hp
    tr = vmem_budget_bytes // per_row
    tr = min(tr, 1024)                      # diminishing returns past ~512-1024 rows
    tr = min(tr, pl.cdiv(rows, 8) * 8)      # no point exceeding the (padded) row count
    tr = max(tr, 8)
    if tr >= 16:
        tr -= tr % 16                       # multiple of 16: satisfies f32 (8,128) and bf16 (16,128)
    return int(tr)


def layer_norm(x, alpha, bias, *, eps=EPS, tile_rows=None,
               vmem_limit_bytes=32 * 1024 * 1024):
    """x: (..., H) float array. alpha, bias: shape (1,) params. Normalizes over the last axis."""
    orig_shape = x.shape
    H = orig_shape[-1]
    rows = math.prod(orig_shape[:-1])
    x2 = x.reshape(rows, H)

    # Lane-dense hidden dim: pad up to a multiple of 128; stats are masked inside the kernel.
    Hp = pl.cdiv(H, LANE) * LANE

    itemsize = jnp.dtype(x.dtype).itemsize
    if tile_rows is None:
        tile_rows = _pick_tile_rows(rows, Hp, itemsize, 20 * 1024 * 1024)

    # Handle non-divisible row counts with padding (padded rows are all-zero; sliced off below).
    rows_p = pl.cdiv(rows, tile_rows) * tile_rows
    if rows_p != rows or Hp != H:
        x2 = jnp.pad(x2, ((0, rows_p - rows), (0, Hp - H)))

    kernel = functools.partial(layernorm_kernel, h=H, hp=Hp, eps=eps)

    out = pl.pallas_call(
        kernel,
        out_shape=jax.ShapeDtypeStruct((rows_p, Hp), x.dtype),
        grid=(rows_p // tile_rows,),
        in_specs=[
            pl.BlockSpec(memory_space=pltpu.SMEM),             # alpha (scalar)
            pl.BlockSpec(memory_space=pltpu.SMEM),             # bias  (scalar)
            pl.BlockSpec((tile_rows, Hp), lambda i: (i, 0)),   # x tile
        ],
        out_specs=pl.BlockSpec((tile_rows, Hp), lambda i: (i, 0)),
        compiler_params=pltpu.CompilerParams(
            dimension_semantics=("parallel",),   # shard the row grid across TensorCores (v7x)
            vmem_limit_bytes=vmem_limit_bytes,   # 32 MiB scoped: safe on v5e/v6e/v7x
        ),
    )(alpha, bias, x2)

    if rows_p != rows or Hp != H:
        out = out[:rows, :H]
    return out.reshape(orig_shape)


def _reference(x, alpha, bias, eps=EPS):
    mean = jnp.mean(x, axis=-1, keepdims=True)
    std = jnp.std(x, axis=-1, keepdims=True, ddof=1)   # torch.std default: unbiased
    return alpha[0] * (x - mean) / (std + eps) + bias[0]


if __name__ == "__main__":
    key = jax.random.PRNGKey(0)
    alpha = jnp.ones((1,), dtype=jnp.float32)   # nn.Parameter(torch.ones(1))
    bias = jnp.zeros((1,), dtype=jnp.float32)   # nn.Parameter(torch.zeros(1))

    # Case 1: small hidden (H=32) -> exercises the lane-padded + masked-stats path.
    k1, k2 = jax.random.split(key)
    x1 = jax.random.normal(k1, (2, 8, 32), dtype=jnp.float32)
    y1 = layer_norm(x1, alpha, bias)
    jax.block_until_ready(y1)
    assert jnp.allclose(y1, _reference(x1, alpha, bias), atol=1e-5, rtol=1e-5), "mismatch (H=32)"

    # Case 2: lane-dense hidden (H=128), non-divisible row count -> exercises row padding.
    x2 = jax.random.normal(k2, (2, 7, 128), dtype=jnp.float32)
    y2 = layer_norm(x2, alpha, bias)
    jax.block_until_ready(y2)
    assert jnp.allclose(y2, _reference(x2, alpha, bias), atol=1e-5, rtol=1e-5), "mismatch (H=128)"

    print("KERNEL_OK")
</pallas_src>

<mosaic_0001>
module attributes {stable_mosaic.version = 11 : i64} {
  func.func @layernorm_kernel(%arg0: i32, %arg1: memref<1xf32, #tpu.memory_space<smem>>, %arg2: memref<1xf32, #tpu.memory_space<smem>>, %arg3: memref<16x128xf32, #tpu.memory_space<vmem>>, %arg4: memref<16x128xf32, #tpu.memory_space<vmem>>) attributes {dimension_semantics = [#tpu.dimension_semantics<parallel>], iteration_bounds = array<i64: 1>, scalar_prefetch = 0 : i64, scratch_operands = 0 : i64, tpu.core_type = #tpu.core_type<tc>, window_params = [{transform_indices = @transform_0, window_bounds = array<i64: 1>}, {transform_indices = @transform_1, window_bounds = array<i64: 1>}, {transform_indices = @transform_2, window_bounds = array<i64: 16, 128>}, {transform_indices = @transform_3, window_bounds = array<i64: 16, 128>}]} {
    %c0 = arith.constant 0 : index
    %c0_0 = arith.constant 0 : index
    %0 = vector.load %arg3[%c0, %c0_0] : memref<16x128xf32, #tpu.memory_space<vmem>>, vector<16x128xf32>
    %1 = tpu.iota {dimensions = array<i32: 1>} : vector<16x128xi32>
    %c32_i32 = arith.constant 32 : i32
    %2 = vector.broadcast %c32_i32 : i32 to vector<16x128xi32>
    %3 = arith.cmpi slt, %1, %2 : vector<16x128xi32>
    %cst = arith.constant 0.000000e+00 : f32
    %4 = vector.broadcast %cst : f32 to vector<16x128xf32>
    %5 = arith.select %3, %0, %4 : vector<16x128xi1>, vector<16x128xf32>
    %cst_1 = arith.constant dense<0.000000e+00> : vector<16xf32>
    %6 = vector.multi_reduction <add>, %5, %cst_1 [1] : vector<16x128xf32> to vector<16xf32>
    %7 = vector.shape_cast %6 : vector<16xf32> to vector<16x1xf32>
    %cst_2 = arith.constant 3.125000e-02 : f32
    %8 = vector.broadcast %cst_2 : f32 to vector<16x1xf32>
    %9 = arith.mulf %7, %8 : vector<16x1xf32>
    %10 = vector.broadcast %9 : vector<16x1xf32> to vector<16x128xf32>
    %11 = arith.subf %0, %10 : vector<16x128xf32>
    %cst_3 = arith.constant 0.000000e+00 : f32
    %12 = vector.broadcast %cst_3 : f32 to vector<16x128xf32>
    %13 = arith.select %3, %11, %12 : vector<16x128xi1>, vector<16x128xf32>
    %14 = arith.mulf %13, %13 : vector<16x128xf32>
    %cst_4 = arith.constant dense<0.000000e+00> : vector<16xf32>
    %15 = vector.multi_reduction <add>, %14, %cst_4 [1] : vector<16x128xf32> to vector<16xf32>
    %16 = vector.shape_cast %15 : vector<16xf32> to vector<16x1xf32>
    %cst_5 = arith.constant 0.0322580636 : f32
    %17 = vector.broadcast %cst_5 : f32 to vector<16x1xf32>
    %18 = arith.mulf %16, %17 : vector<16x1xf32>
    %19 = math.sqrt %18 : vector<16x1xf32>
    %cst_6 = arith.constant 9.99999997E-7 : f32
    %20 = vector.broadcast %cst_6 : f32 to vector<16x1xf32>
    %21 = arith.addf %19, %20 : vector<16x1xf32>
    %22 = tpu.reciprocal %21 : vector<16x1xf32> -> vector<16x1xf32>
    %c0_7 = arith.constant 0 : index
    %23 = memref.load %arg1[%c0_7] : memref<1xf32, #tpu.memory_space<smem>>
    %24 = vector.broadcast %23 : f32 to vector<16x1xf32>
    %25 = arith.mulf %24, %22 : vector<16x1xf32>
    %26 = vector.broadcast %25 : vector<16x1xf32> to vector<16x128xf32>
    %27 = arith.mulf %11, %26 : vector<16x128xf32>
    %c0_8 = arith.constant 0 : index
    %28 = memref.load %arg2[%c0_8] : memref<1xf32, #tpu.memory_space<smem>>
    %29 = vector.broadcast %28 : f32 to vector<16x128xf32>
    %30 = arith.addf %27, %29 : vector<16x128xf32>
    %c0_9 = arith.constant 0 : index
    %c0_10 = arith.constant 0 : index
    %31 = vector.load %arg4[%c0_9, %c0_10] : memref<16x128xf32, #tpu.memory_space<vmem>>, vector<16x128xf32>
    tpu.vector_store %arg4[%c0_9, %c0_10], %30 {strides = array<i32>} : memref<16x128xf32, #tpu.memory_space<vmem>>, vector<16x128xf32>,
    return
  }
  func.func @transform_0(%arg0: i32) -> i32 {
    %c0_i32 = arith.constant 0 : i32
    %c0_i32_0 = arith.constant 0 : i32
    return %c0_i32 : i32
  }
  func.func @transform_1(%arg0: i32) -> i32 {
    %c0_i32 = arith.constant 0 : i32
    %c0_i32_0 = arith.constant 0 : i32
    return %c0_i32 : i32
  }
  func.func @transform_2(%arg0: i32) -> (i32, i32) {
    %c0_i32 = arith.constant 0 : i32
    %c0_i32_0 = arith.constant 0 : i32
    return %arg0, %c0_i32 : i32, i32
  }
  func.func @transform_3(%arg0: i32) -> (i32, i32) {
    %c0_i32 = arith.constant 0 : i32
    %c0_i32_0 = arith.constant 0 : i32
    return %arg0, %c0_i32 : i32, i32
  }
}

</mosaic_0001>

<llo_original>
// kernel: tpu_custom_call.1
$region0: #{tpu_custom_call.1}
  #allocation0 [shape = 'u32[]', space=smem, size = 0x4, offset = 0x4, fixed_abs, tag = 'smem constant byte address 0x4 - core index']
  #allocation1 [shape = 'u32[144,128]{1,0:T(1,128)}', space=vmem, size = 0x12000, scoped, tag = 'internal scratch']
  #allocation2 [shape = 'f32[1]{0:T(128)S(6)}', space=smem, size = 0x200, scoped, tag = 'scoped memory for tpu_custom_call.1']
  #allocation3 [shape = 'f32[1]{0:T(128)S(6)}', space=smem, size = 0x200, scoped, tag = 'scoped memory for tpu_custom_call.1']
  %s0 = inlined_call_operand.<no memory space> [shape: f32[1], index: 0, kind: input, shape index: {}]
  %s1 = inlined_call_operand.<no memory space> [shape: f32[1], index: 1, kind: input, shape index: {}]
  %s2 = inlined_call_operand.hbm [shape: f32[16,128], index: 2, kind: input, shape index: {}]
  %s3 = inlined_call_operand.hbm [shape: f32[16,128], index: 3, kind: output, shape index: {}]
  %s4 = sld [smem:[#allocation0]]
  $region26: #{tpu_custom_call.1} parent=0
    _
  %s6 = ssub.s32 1, %s4
  %s7 = scalar_select 0, %s6, %s4
  %8 = sst [smem:[#allocation2]] %s0
  %9 = sst [smem:[#allocation3]] %s1
  $region1: #{tpu_custom_call.1} parent=0
    #allocation4 [shape = 'u8[8192]{0}', space=vmem, size = 0x2000, scoped, tag = 'input window, operand 2, single buffered']
    #allocation5 [shape = 's32[1]{0}', space=sflag, size = 0x4, scoped, tag = 'scoped memory for tpu_custom_call.1']
    #allocation6 [shape = 's32[1]{0}', space=sflag, size = 0x4, scoped, tag = 'scoped memory for tpu_custom_call.1']
    #allocation7 [shape = 'u8[8192]{0}', space=vmem, size = 0x2000, scoped, tag = 'output window, operand 0, single buffered']
    %10 = vsyncpa [#allocation5], 0
    %11 = vsyncpa [#allocation6], 0
    // Predicated region
    $region2: #{tpu_custom_call.1} parent=1 // pred_check
      _
    $region3: #{tpu_custom_call.1} parent=1 // pred_check_branch
      %13 = sbr.rel (0) target = $region5
    $region4: #{tpu_custom_call.1} parent=1 // pred_region
      _
    $region5: #{tpu_custom_call.1} parent=1 // pred_fallthru
      _
    // Predicated region
    $region6: #{tpu_custom_call.1} parent=1 // pred_check
      _
    $region7: #{tpu_custom_call.1} parent=1 // pred_check_branch
      %15 = sbr.rel (0) target = $region9
    $region8: #{tpu_custom_call.1} parent=1 // pred_region
      _
    $region9: #{tpu_custom_call.1} parent=1 // pred_fallthru
      _
    // Predicated region
    $region10: #{tpu_custom_call.1} parent=1 // pred_check
      _
    $region11: #{tpu_custom_call.1} parent=1 // pred_check_branch
      %17 = sbr.rel (0) target = $region13
    $region12: #{tpu_custom_call.1} parent=1 // pred_region
      %s19 = ssub.s32 256, 256
      %20 = vsyncadd [#allocation5], %s19
      %s21 = sshll.u32 [#allocation4], 4
      %s22 = int_to_ptr.vmem [resolvable:$true] %s21
      %27 = dma.hbm_to_vmem [thread:$0]  %s2, 256, %s22, [#allocation5], 128, 128, 8
    $region13: #{tpu_custom_call.1} parent=1 // pred_fallthru
      _
    // Predicated region
    $region14: #{tpu_custom_call.1} parent=1 // pred_check
      _
    $region15: #{tpu_custom_call.1} parent=1 // pred_check_branch
      %29 = sbr.rel (0) target = $region17
    $region16: #{tpu_custom_call.1} parent=1 // pred_region
      %30 = dma.done [#allocation5], 256
    $region17: #{tpu_custom_call.1} parent=1 // pred_fallthru
      _
    %v31 = vld [vmem:[#allocation4] sm:$0xff]
    %v32 = vld [vmem:[#allocation4 + $0x8] sm:$0xff]
    %v33 = vlaneseq
    %v34 = vand.u32 %v33, 127
    %vm35 = vcmp.lt.s32.totalorder %v34, 32
    %v36 = vsel %vm35, %v31, 0.0
    %v37 = vsel %vm35, %v32, 0.0
    %38 = vadd.xlane.f32.xlu0 %v36
    %v39 = vpop.xlane.xlu0 %38
    %40 = vadd.xlane.f32.xlu0 %v37
    %v41 = vpop.xlane.xlu0 %40
    %v42 = vmul.f32 %v39, 0.03125
    %v43 = vmul.f32 %v41, 0.03125
    %v44 = vsub.f32 %v31, %v42
    %v45 = vsub.f32 %v32, %v43
    %v46 = vsel %vm35, %v44, 0.0
    %v47 = vsel %vm35, %v45, 0.0
    %v48 = vmul.f32 %v46, %v46
    %v49 = vmul.f32 %v47, %v47
    %50 = vadd.xlane.f32.xlu0 %v48
    %v51 = vpop.xlane.xlu0 %50
    %52 = vadd.xlane.f32.xlu0 %v49
    %v53 = vpop.xlane.xlu0 %52
    %v54 = vmul.f32 %v51, 0.032258064
    %v55 = vmul.f32 %v53, 0.032258064
    %v56 = vrsqrt.pop %v54
    %v57 = vmul.f32 %v54, %v56
    %vm58 = vcmp.eq.f32.partialorder %v54, inf
    %v59 = vsel %vm58, %v54, %v57
    %vm60 = vcmp.eq.f32.partialorder %v54, 0.0
    %v61 = vand.u32 %v54, 2147483648
    %v62 = vsel %vm60, %v61, %v59
    %v63 = vrsqrt.pop %v55
    %v64 = vmul.f32 %v55, %v63
    %vm65 = vcmp.eq.f32.partialorder %v55, inf
    %v66 = vsel %vm65, %v55, %v64
    %vm67 = vcmp.eq.f32.partialorder %v55, 0.0
    %v68 = vand.u32 %v55, 2147483648
    %v69 = vsel %vm67, %v68, %v66
    %v70 = vadd.f32 %v62, 1e-06
    %v71 = vadd.f32 %v69, 1e-06
    %v72 = vrcp.pop %v70
    %v73 = vrcp.pop %v71
    %s74 = sld [smem:[#allocation2]]
    %v75 = vstv %s74
    %v76 = vmul.f32 %v75, %v72
    %v77 = vmul.f32 %v75, %v73
    %v78 = vmul.f32 %v44, %v76
    %v79 = vmul.f32 %v45, %v77
    %s80 = sld [smem:[#allocation3]]
    %v81 = vstv %s80
    %v82 = vadd.f32 %v78, %v81
    %v83 = vadd.f32 %v79, %v81
    %84 = vst [vmem:[#allocation7] sm:$0xff] %v82
    %85 = vst [vmem:[#allocation7 + $0x8] sm:$0xff] %v83
    // Predicated region
    $region18: #{tpu_custom_call.1} parent=1 // pred_check
      _
    $region19: #{tpu_custom_call.1} parent=1 // pred_check_branch
      %87 = sbr.rel (0) target = $region21
    $region20: #{tpu_custom_call.1} parent=1 // pred_region
      %s89 = ssub.s32 256, 256
      %90 = vsyncadd [#allocation6], %s89
      %s91 = sshll.u32 [#allocation7], 4
      %s92 = int_to_ptr.vmem [resolvable:$true] %s91
      %97 = dma.vmem_to_hbm [thread:$0]  %s92, 256, %s3, [#allocation6], 128, 128, 8
    $region21: #{tpu_custom_call.1} parent=1 // pred_fallthru
      _
    // Predicated region
    $region22: #{tpu_custom_call.1} parent=1 // pred_check
      _
    $region23: #{tpu_custom_call.1} parent=1 // pred_check_branch
      %99 = sbr.rel (0) target = $region25
    $region24: #{tpu_custom_call.1} parent=1 // pred_region
      %100 = dma.done [#allocation6], 256
    $region25: #{tpu_custom_call.1} parent=1 // pred_fallthru
      _
    %101 = vsyncpa [#allocation5], 1
    %102 = vsyncpa [#allocation6], 1

</llo_original>
